<compile_context>
chip_gen: v7x
topology: tpu7x:2x2x1
jax: 0.10.0
libtpu: 0.0.40
codegen_flags: <defaults>
</compile_context>

<pallas_src>
import functools

import jax
import jax.numpy as jnp
from jax.experimental import pallas as pl
from jax.experimental.pallas import tpu as pltpu


def _round_up(x, m):
    return (x + m - 1) // m * m


def lr_kernel(tokens_ref, m_ref, bias_ref, out_ref, *, S, L, V):
    """One batch tile: build token counts, single MXU matmul, add bias."""
    TB = out_ref.shape[0]
    toks = tokens_ref[...]                                        # [TB, S*L] int32
    iota_v = jax.lax.broadcasted_iota(jnp.int32, (TB, V), 1)      # [TB, V]

    # Accumulate per-sentence token counts on the VPU (S, L are small & static).
    per_field = []
    for s in range(S):
        counts = jnp.zeros((TB, V), jnp.float32)
        for l in range(L):
            col = toks[:, s * L + l:s * L + l + 1]                # [TB, 1]
            counts = counts + (col == iota_v).astype(jnp.float32)
        per_field.append(counts)
    counts_all = jnp.concatenate(per_field, axis=-1)              # [TB, S*V]

    # Single fused contraction: (counts/L) @ (E @ W_s stacked)  ==  pooled @ W.
    acc = jnp.dot(counts_all.astype(jnp.bfloat16), m_ref[...],
                  preferred_element_type=jnp.float32)             # [TB, Cpad] f32
    out_ref[...] = acc + bias_ref[...]                            # lane-dense store


def lr_forward(tokens, embed_w, fc_w, fc_b, *, mean=True, batch_tile=256):
    """tokens: int32 [S, B, L]; embed_w: [V, D]; fc_w: [C, S*D]; fc_b: [C]."""
    S, B, L = tokens.shape
    V, D = embed_w.shape
    C = fc_w.shape[0]
    assert fc_w.shape[1] == S * D

    Cpad = _round_up(C, 128)
    TB = min(_round_up(batch_tile, 8), _round_up(B, 8))
    B_pad = _round_up(B, TB)

    # Lane-dense tokens: [B, S*L] int32, zero-padded along batch (padded rows
    # are computed and sliced away).
    toks = jnp.transpose(jnp.asarray(tokens, jnp.int32), (1, 0, 2)).reshape(B, S * L)
    toks = jnp.pad(toks, ((0, B_pad - B), (0, 0)))

    # Pre-fold embedding table into the fc weight (weights are constant per
    # forward): M[s*V + v, c] = sum_d E[v, d] * W[c, s*D + d]; fold 1/L (mean).
    E = jnp.asarray(embed_w, jnp.float32)
    W = jnp.asarray(fc_w, jnp.float32).reshape(C, S, D)
    M = jnp.einsum("vd,csd->svc", E, W).reshape(S * V, C)
    if mean:
        M = M * (1.0 / L)
    M = jnp.pad(M, ((0, 0), (0, Cpad - C))).astype(jnp.bfloat16)

    bias = jnp.pad(jnp.asarray(fc_b, jnp.float32), (0, Cpad - C)).reshape(1, Cpad)

    kernel = functools.partial(lr_kernel, S=S, L=L, V=V)
    out = pl.pallas_call(
        kernel,
        out_shape=jax.ShapeDtypeStruct((B_pad, Cpad), jnp.float32),
        grid=(B_pad // TB,),
        in_specs=[
            pl.BlockSpec((TB, S * L), lambda b: (b, 0)),      # tokens (batch-tiled)
            pl.BlockSpec((S * V, Cpad), lambda b: (0, 0)),    # folded weight (resident)
            pl.BlockSpec((1, Cpad), lambda b: (0, 0)),        # bias (resident)
        ],
        out_specs=pl.BlockSpec((TB, Cpad), lambda b: (b, 0)),
        compiler_params=pltpu.CompilerParams(
            dimension_semantics=("parallel",)),
    )(toks, M, bias)
    return out[:B, :C]


def lr_reference(tokens, embed_w, fc_w, fc_b, *, mean=True):
    """Pure-JAX f32 reference mirroring the PyTorch forward."""
    S, B, L = tokens.shape
    pooled = []
    for s in range(S):
        e = jnp.take(embed_w, tokens[s], axis=0)            # [B, L, D]
        p = e.mean(axis=1) if mean else e.sum(axis=1)       # [B, D]
        pooled.append(p)
    x = jnp.concatenate(pooled, axis=1)                     # [B, S*D]
    return x @ fc_w.T + fc_b


if __name__ == "__main__":
    key = jax.random.PRNGKey(0)
    k1, k2, k3, k4 = jax.random.split(key, 4)

    # Small synthetic shapes consistent with the module:
    #   tasks[task][0] = S (number of sentence fields), tasks[task][1] = C classes
    V, D = 64, 32          # vocab size, embed_dim
    S, C = 2, 3            # sentence fields, num classes
    B, L = 12, 8           # batch, seq length

    tokens = jax.random.randint(k1, (S, B, L), 0, V, dtype=jnp.int32)
    embed_w = jax.random.normal(k2, (V, D), dtype=jnp.float32)
    fc_w = jax.random.normal(k3, (C, S * D), dtype=jnp.float32) * 0.05
    fc_b = jax.random.normal(k4, (C,), dtype=jnp.float32) * 0.05

    for mean in (True, False):
        out = lr_forward(tokens, embed_w, fc_w, fc_b, mean=mean, batch_tile=8)
        out = jax.block_until_ready(out)
        ref = lr_reference(tokens, embed_w, fc_w, fc_b, mean=mean)
        assert out.shape == (B, C)
        # bf16 MXU operands with f32 accumulation -> loosened tolerance.
        assert jnp.allclose(out, ref, atol=2e-2, rtol=2e-2), (mean, out, ref)

    print("KERNEL_OK")
</pallas_src>

<mosaic_0001>
module attributes {stable_mosaic.version = 11 : i64} {
  func.func @lr_kernel(%arg0: i32, %arg1: memref<8x16xi32, #tpu.memory_space<vmem>>, %arg2: memref<128x128xbf16, #tpu.memory_space<vmem>>, %arg3: memref<1x128xf32, #tpu.memory_space<vmem>>, %arg4: memref<8x128xf32, #tpu.memory_space<vmem>>) attributes {dimension_semantics = [#tpu.dimension_semantics<parallel>], iteration_bounds = array<i64: 2>, scalar_prefetch = 0 : i64, scratch_operands = 0 : i64, tpu.core_type = #tpu.core_type<tc>, window_params = [{transform_indices = @transform_0, window_bounds = array<i64: 8, 16>}, {pipeline_mode = #tpu.pipeline_mode<synchronous>, transform_indices = @transform_1, window_bounds = array<i64: 128, 128>}, {pipeline_mode = #tpu.pipeline_mode<synchronous>, transform_indices = @transform_2, window_bounds = array<i64: 1, 128>}, {transform_indices = @transform_3, window_bounds = array<i64: 8, 128>}]} {
    %c0 = arith.constant 0 : index
    %c0_0 = arith.constant 0 : index
    %0 = vector.load %arg1[%c0, %c0_0] : memref<8x16xi32, #tpu.memory_space<vmem>>, vector<8x16xi32>
    %1 = tpu.iota {dimensions = array<i32: 1>} : vector<8x64xi32>
    %cst = arith.constant 0.000000e+00 : f32
    %2 = vector.broadcast %cst : f32 to vector<8x64xf32>
    %3 = vector.extract_strided_slice %0 {offsets = [0, 0], sizes = [8, 1], strides = [1, 1]} : vector<8x16xi32> to vector<8x1xi32>
    %4 = vector.broadcast %3 : vector<8x1xi32> to vector<8x64xi32>
    %5 = arith.cmpi eq, %4, %1 : vector<8x64xi32>
    %6 = arith.extui %5 : vector<8x64xi1> to vector<8x64xi32>
    %7 = arith.sitofp %6 : vector<8x64xi32> to vector<8x64xf32>
    %8 = arith.addf %2, %7 : vector<8x64xf32>
    %9 = vector.extract_strided_slice %0 {offsets = [0, 1], sizes = [8, 1], strides = [1, 1]} : vector<8x16xi32> to vector<8x1xi32>
    %10 = vector.broadcast %9 : vector<8x1xi32> to vector<8x64xi32>
    %11 = arith.cmpi eq, %10, %1 : vector<8x64xi32>
    %12 = arith.extui %11 : vector<8x64xi1> to vector<8x64xi32>
    %13 = arith.sitofp %12 : vector<8x64xi32> to vector<8x64xf32>
    %14 = arith.addf %8, %13 : vector<8x64xf32>
    %15 = vector.extract_strided_slice %0 {offsets = [0, 2], sizes = [8, 1], strides = [1, 1]} : vector<8x16xi32> to vector<8x1xi32>
    %16 = vector.broadcast %15 : vector<8x1xi32> to vector<8x64xi32>
    %17 = arith.cmpi eq, %16, %1 : vector<8x64xi32>
    %18 = arith.extui %17 : vector<8x64xi1> to vector<8x64xi32>
    %19 = arith.sitofp %18 : vector<8x64xi32> to vector<8x64xf32>
    %20 = arith.addf %14, %19 : vector<8x64xf32>
    %21 = vector.extract_strided_slice %0 {offsets = [0, 3], sizes = [8, 1], strides = [1, 1]} : vector<8x16xi32> to vector<8x1xi32>
    %22 = vector.broadcast %21 : vector<8x1xi32> to vector<8x64xi32>
    %23 = arith.cmpi eq, %22, %1 : vector<8x64xi32>
    %24 = arith.extui %23 : vector<8x64xi1> to vector<8x64xi32>
    %25 = arith.sitofp %24 : vector<8x64xi32> to vector<8x64xf32>
    %26 = arith.addf %20, %25 : vector<8x64xf32>
    %27 = vector.extract_strided_slice %0 {offsets = [0, 4], sizes = [8, 1], strides = [1, 1]} : vector<8x16xi32> to vector<8x1xi32>
    %28 = vector.broadcast %27 : vector<8x1xi32> to vector<8x64xi32>
    %29 = arith.cmpi eq, %28, %1 : vector<8x64xi32>
    %30 = arith.extui %29 : vector<8x64xi1> to vector<8x64xi32>
    %31 = arith.sitofp %30 : vector<8x64xi32> to vector<8x64xf32>
    %32 = arith.addf %26, %31 : vector<8x64xf32>
    %33 = vector.extract_strided_slice %0 {offsets = [0, 5], sizes = [8, 1], strides = [1, 1]} : vector<8x16xi32> to vector<8x1xi32>
    %34 = vector.broadcast %33 : vector<8x1xi32> to vector<8x64xi32>
    %35 = arith.cmpi eq, %34, %1 : vector<8x64xi32>
    %36 = arith.extui %35 : vector<8x64xi1> to vector<8x64xi32>
    %37 = arith.sitofp %36 : vector<8x64xi32> to vector<8x64xf32>
    %38 = arith.addf %32, %37 : vector<8x64xf32>
    %39 = vector.extract_strided_slice %0 {offsets = [0, 6], sizes = [8, 1], strides = [1, 1]} : vector<8x16xi32> to vector<8x1xi32>
    %40 = vector.broadcast %39 : vector<8x1xi32> to vector<8x64xi32>
    %41 = arith.cmpi eq, %40, %1 : vector<8x64xi32>
    %42 = arith.extui %41 : vector<8x64xi1> to vector<8x64xi32>
    %43 = arith.sitofp %42 : vector<8x64xi32> to vector<8x64xf32>
    %44 = arith.addf %38, %43 : vector<8x64xf32>
    %45 = vector.extract_strided_slice %0 {offsets = [0, 7], sizes = [8, 1], strides = [1, 1]} : vector<8x16xi32> to vector<8x1xi32>
    %46 = vector.broadcast %45 : vector<8x1xi32> to vector<8x64xi32>
    %47 = arith.cmpi eq, %46, %1 : vector<8x64xi32>
    %48 = arith.extui %47 : vector<8x64xi1> to vector<8x64xi32>
    %49 = arith.sitofp %48 : vector<8x64xi32> to vector<8x64xf32>
    %50 = arith.addf %44, %49 : vector<8x64xf32>
    %cst_1 = arith.constant 0.000000e+00 : f32
    %51 = vector.broadcast %cst_1 : f32 to vector<8x64xf32>
    %52 = vector.extract_strided_slice %0 {offsets = [0, 8], sizes = [8, 1], strides = [1, 1]} : vector<8x16xi32> to vector<8x1xi32>
    %53 = vector.broadcast %52 : vector<8x1xi32> to vector<8x64xi32>
    %54 = arith.cmpi eq, %53, %1 : vector<8x64xi32>
    %55 = arith.extui %54 : vector<8x64xi1> to vector<8x64xi32>
    %56 = arith.sitofp %55 : vector<8x64xi32> to vector<8x64xf32>
    %57 = arith.addf %51, %56 : vector<8x64xf32>
    %58 = vector.extract_strided_slice %0 {offsets = [0, 9], sizes = [8, 1], strides = [1, 1]} : vector<8x16xi32> to vector<8x1xi32>
    %59 = vector.broadcast %58 : vector<8x1xi32> to vector<8x64xi32>
    %60 = arith.cmpi eq, %59, %1 : vector<8x64xi32>
    %61 = arith.extui %60 : vector<8x64xi1> to vector<8x64xi32>
    %62 = arith.sitofp %61 : vector<8x64xi32> to vector<8x64xf32>
    %63 = arith.addf %57, %62 : vector<8x64xf32>
    %64 = vector.extract_strided_slice %0 {offsets = [0, 10], sizes = [8, 1], strides = [1, 1]} : vector<8x16xi32> to vector<8x1xi32>
    %65 = vector.broadcast %64 : vector<8x1xi32> to vector<8x64xi32>
    %66 = arith.cmpi eq, %65, %1 : vector<8x64xi32>
    %67 = arith.extui %66 : vector<8x64xi1> to vector<8x64xi32>
    %68 = arith.sitofp %67 : vector<8x64xi32> to vector<8x64xf32>
    %69 = arith.addf %63, %68 : vector<8x64xf32>
    %70 = vector.extract_strided_slice %0 {offsets = [0, 11], sizes = [8, 1], strides = [1, 1]} : vector<8x16xi32> to vector<8x1xi32>
    %71 = vector.broadcast %70 : vector<8x1xi32> to vector<8x64xi32>
    %72 = arith.cmpi eq, %71, %1 : vector<8x64xi32>
    %73 = arith.extui %72 : vector<8x64xi1> to vector<8x64xi32>
    %74 = arith.sitofp %73 : vector<8x64xi32> to vector<8x64xf32>
    %75 = arith.addf %69, %74 : vector<8x64xf32>
    %76 = vector.extract_strided_slice %0 {offsets = [0, 12], sizes = [8, 1], strides = [1, 1]} : vector<8x16xi32> to vector<8x1xi32>
    %77 = vector.broadcast %76 : vector<8x1xi32> to vector<8x64xi32>
    %78 = arith.cmpi eq, %77, %1 : vector<8x64xi32>
    %79 = arith.extui %78 : vector<8x64xi1> to vector<8x64xi32>
    %80 = arith.sitofp %79 : vector<8x64xi32> to vector<8x64xf32>
    %81 = arith.addf %75, %80 : vector<8x64xf32>
    %82 = vector.extract_strided_slice %0 {offsets = [0, 13], sizes = [8, 1], strides = [1, 1]} : vector<8x16xi32> to vector<8x1xi32>
    %83 = vector.broadcast %82 : vector<8x1xi32> to vector<8x64xi32>
    %84 = arith.cmpi eq, %83, %1 : vector<8x64xi32>
    %85 = arith.extui %84 : vector<8x64xi1> to vector<8x64xi32>
    %86 = arith.sitofp %85 : vector<8x64xi32> to vector<8x64xf32>
    %87 = arith.addf %81, %86 : vector<8x64xf32>
    %88 = vector.extract_strided_slice %0 {offsets = [0, 14], sizes = [8, 1], strides = [1, 1]} : vector<8x16xi32> to vector<8x1xi32>
    %89 = vector.broadcast %88 : vector<8x1xi32> to vector<8x64xi32>
    %90 = arith.cmpi eq, %89, %1 : vector<8x64xi32>
    %91 = arith.extui %90 : vector<8x64xi1> to vector<8x64xi32>
    %92 = arith.sitofp %91 : vector<8x64xi32> to vector<8x64xf32>
    %93 = arith.addf %87, %92 : vector<8x64xf32>
    %94 = vector.extract_strided_slice %0 {offsets = [0, 15], sizes = [8, 1], strides = [1, 1]} : vector<8x16xi32> to vector<8x1xi32>
    %95 = vector.broadcast %94 : vector<8x1xi32> to vector<8x64xi32>
    %96 = arith.cmpi eq, %95, %1 : vector<8x64xi32>
    %97 = arith.extui %96 : vector<8x64xi1> to vector<8x64xi32>
    %98 = arith.sitofp %97 : vector<8x64xi32> to vector<8x64xf32>
    %99 = arith.addf %93, %98 : vector<8x64xf32>
    %100 = tpu.concatenate %50, %99 in 1 : vector<8x64xf32>, vector<8x64xf32> -> vector<8x128xf32>
    %101 = arith.truncf %100 : vector<8x128xf32> to vector<8x128xbf16>
    %c0_2 = arith.constant 0 : index
    %c0_3 = arith.constant 0 : index
    %102 = vector.load %arg2[%c0_2, %c0_3] : memref<128x128xbf16, #tpu.memory_space<vmem>>, vector<128x128xbf16>
    %cst_4 = arith.constant dense<0.000000e+00> : vector<8x128xf32>
    %103 = tpu.matmul %101, %102, %cst_4 {dimension_numbers = #tpu.dot_dimension_numbers<[1], [0], [0], [1], [0, 0, 1, 1], [], []>} : vector<8x128xbf16>, vector<128x128xbf16>, vector<8x128xf32> -> vector<8x128xf32>
    %c0_5 = arith.constant 0 : index
    %c0_6 = arith.constant 0 : index
    %104 = vector.load %arg3[%c0_5, %c0_6] : memref<1x128xf32, #tpu.memory_space<vmem>>, vector<1x128xf32>
    %105 = vector.broadcast %104 : vector<1x128xf32> to vector<8x128xf32>
    %106 = arith.addf %103, %105 : vector<8x128xf32>
    %c0_7 = arith.constant 0 : index
    %c0_8 = arith.constant 0 : index
    %107 = vector.load %arg4[%c0_7, %c0_8] : memref<8x128xf32, #tpu.memory_space<vmem>>, vector<8x128xf32>
    tpu.vector_store %arg4[%c0_7, %c0_8], %106 {strides = array<i32>} : memref<8x128xf32, #tpu.memory_space<vmem>>, vector<8x128xf32>,
    return
  }
  func.func @transform_0(%arg0: i32) -> (i32, i32) {
    %c0_i32 = arith.constant 0 : i32
    %c0_i32_0 = arith.constant 0 : i32
    return %arg0, %c0_i32 : i32, i32
  }
  func.func @transform_1(%arg0: i32) -> (i32, i32) {
    %c0_i32 = arith.constant 0 : i32
    %c0_i32_0 = arith.constant 0 : i32
    %c0_i32_1 = arith.constant 0 : i32
    return %c0_i32, %c0_i32_0 : i32, i32
  }
  func.func @transform_2(%arg0: i32) -> (i32, i32) {
    %c0_i32 = arith.constant 0 : i32
    %c0_i32_0 = arith.constant 0 : i32
    %c0_i32_1 = arith.constant 0 : i32
    return %c0_i32, %c0_i32_0 : i32, i32
  }
  func.func @transform_3(%arg0: i32) -> (i32, i32) {
    %c0_i32 = arith.constant 0 : i32
    %c0_i32_0 = arith.constant 0 : i32
    return %arg0, %c0_i32 : i32, i32
  }
}

</mosaic_0001>

<llo_original>
// kernel: tpu_custom_call.1
$region0: #{tpu_custom_call.1}
  #allocation0 [shape = 'u32[]', space=smem, size = 0x4, offset = 0x4, fixed_abs, tag = 'smem constant byte address 0x4 - core index']
  #allocation1 [shape = 'u32[144,128]{1,0:T(1,128)}', space=vmem, size = 0x12000, scoped, tag = 'internal scratch']
  %s0 = inlined_call_operand.hbm [shape: s32[16,16], index: 0, kind: input, shape index: {}]
  %s1 = inlined_call_operand.hbm [shape: bf16[128,128], index: 1, kind: input, shape index: {}]
  %s2 = inlined_call_operand.vmem [shape: f32[1,128], index: 2, kind: input, shape index: {}]
  %s3 = inlined_call_operand.hbm [shape: f32[16,128], index: 3, kind: output, shape index: {}]
  %s4 = sld [smem:[#allocation0]]
  $region53: #{tpu_custom_call.1} parent=0
    _
  %s6 = ssub.s32 1, %s4
  %s7 = scalar_select 0, %s6, %s4
  $region1: #{tpu_custom_call.1} parent=0
    #allocation2 [shape = 'u8[8192]{0}', space=vmem, size = 0x2000, scoped, tag = 'input window, operand 0']
    #allocation3 [shape = 's32[2]{0}', space=sflag, size = 0x8, scoped, tag = 'scoped memory for tpu_custom_call.1']
    #allocation4 [shape = 's32[2]{0}', space=sflag, size = 0x8, scoped, tag = 'scoped memory for tpu_custom_call.1']
    #allocation5 [shape = 'u8[32768]{0}', space=vmem, size = 0x8000, scoped, tag = 'input window, operand 1, single buffered']
    #allocation6 [shape = 's32[1]{0}', space=sflag, size = 0x4, scoped, tag = 'scoped memory for tpu_custom_call.1']
    #allocation7 [shape = 'u8[8192]{0}', space=vmem, size = 0x2000, scoped, tag = 'output window, operand 0']
    %8 = vsyncpa [#allocation3], 0
    %s9 = scalar_lea.sflag [#allocation3], 1
    %10 = vsyncpa %s9, 0
    %11 = vsyncpa [#allocation6], 0
    %12 = vsyncpa [#allocation4], 0
    %s13 = scalar_lea.sflag [#allocation4], 1
    %14 = vsyncpa %s13, 0
    loop: start=0, step=1, limit=4
    $region2: #{tpu_custom_call.1} parent=1 // loop_pre_header
      _
    $region3: #{tpu_custom_call.1} parent=1 // loop_header
      %s16 = sphi 0, %s20
      %p17 = scmp.ge.s32.totalorder %s16, 4
      %s26 = sphi 0, %s28
      %s29 = sphi 0, %s26
      %s30 = sphi 0, %s29
      %s46 = sphi 0, %s30
      %s50 = sphi 0, %s50
      %s52 = sphi 0, %s50
      %s53 = sphi 0, %s52
      %s67 = sphi 0, %s53
      %s71 = sphi 0, %s71
      %s73 = sphi 0, %s71
      %s74 = sphi 0, %s73
      %s88 = sphi 0, %s74
      %s94 = sphi 0, %s96
      %s97 = sphi 0, %s94
      %s98 = sphi 0, %s97
      %s114 = sphi 0, %s98
    $region4: #{tpu_custom_call.1} parent=1 // loop_header_branch
      %19 = sbr.rel (%p17) target = $region8
    $region5: #{tpu_custom_call.1} parent=1 // loop_body
      %s21 = ssub.s32 %s16, 1
      %s22 = ssub.s32 %s16, 2
      %s23 = sadd.s32 %s16, 1
      %s24 = ssub.s32 %s16, %s23
      %p25 = scmp.eq.s32.totalorder %s24, 0
      %s27 = sadd.s32 %s26, 1
      %s28 = scalar_select %p25, %s26, %s27
      %p31 = pneg %p25
      %p32 = scmp.eq.s32.totalorder %s16, 1
      %p33 = por %p31, %p32
      %p34 = scmp.ne.s32.totalorder %s26, %s29
      %p35 = scmp.eq.s32.totalorder %s16, 0
      %p36 = por %p34, %p35
      %p37 = scmp.ne.s32.totalorder %s26, %s29
      %p38 = scmp.eq.s32.totalorder %s21, 1
      %p39 = por %p37, %p38
      %p40 = scmp.ne.s32.totalorder %s29, %s30
      %p41 = scmp.eq.s32.totalorder %s21, 0
      %p42 = por %p40, %p41
      %p43 = scmp.ne.s32.totalorder %s29, %s30
      %p44 = scmp.eq.s32.totalorder %s22, 1
      %p45 = por %p43, %p44
      %p47 = scmp.ne.s32.totalorder %s30, %s46
      %p48 = scmp.eq.s32.totalorder %s22, 0
      %p49 = por %p47, %p48
      %s51 = sadd.s32 %s50, 1
      %p54 = scmp.eq.s32.totalorder %s16, 1
      %p55 = scmp.ne.s32.totalorder %s50, %s52
      %p56 = scmp.eq.s32.totalorder %s16, 0
      %p57 = por %p55, %p56
      %p58 = scmp.ne.s32.totalorder %s50, %s52
      %p59 = scmp.eq.s32.totalorder %s21, 1
      %p60 = por %p58, %p59
      %p61 = scmp.ne.s32.totalorder %s52, %s53
      %p62 = scmp.eq.s32.totalorder %s21, 0
      %p63 = por %p61, %p62
      %p64 = scmp.ne.s32.totalorder %s52, %s53
      %p65 = scmp.eq.s32.totalorder %s22, 1
      %p66 = por %p64, %p65
      %p68 = scmp.ne.s32.totalorder %s53, %s67
      %p69 = scmp.eq.s32.totalorder %s22, 0
      %p70 = por %p68, %p69
      %s72 = sadd.s32 %s71, 1
      %p75 = scmp.eq.s32.totalorder %s16, 1
      %p76 = scmp.ne.s32.totalorder %s71, %s73
      %p77 = scmp.eq.s32.totalorder %s16, 0
      %p78 = por %p76, %p77
      %p79 = scmp.ne.s32.totalorder %s71, %s73
      %p80 = scmp.eq.s32.totalorder %s21, 1
      %p81 = por %p79, %p80
      %p82 = scmp.ne.s32.totalorder %s73, %s74
      %p83 = scmp.eq.s32.totalorder %s21, 0
      %p84 = por %p82, %p83
      %p85 = scmp.ne.s32.totalorder %s73, %s74
      %p86 = scmp.eq.s32.totalorder %s22, 1
      %p87 = por %p85, %p86
      %p89 = scmp.ne.s32.totalorder %s74, %s88
      %p90 = scmp.eq.s32.totalorder %s22, 0
      %p91 = por %p89, %p90
      %s92 = ssub.s32 %s16, %s23
      %p93 = scmp.eq.s32.totalorder %s92, 0
      %s95 = sadd.s32 %s94, 1
      %s96 = scalar_select %p93, %s94, %s95
      %p99 = pneg %p93
      %p100 = scmp.eq.s32.totalorder %s16, 1
      %p101 = por %p99, %p100
      %p102 = scmp.ne.s32.totalorder %s94, %s97
      %p103 = scmp.eq.s32.totalorder %s16, 0
      %p104 = por %p102, %p103
      %p105 = scmp.ne.s32.totalorder %s94, %s97
      %p106 = scmp.eq.s32.totalorder %s21, 1
      %p107 = por %p105, %p106
      %p108 = scmp.ne.s32.totalorder %s97, %s98
      %p109 = scmp.eq.s32.totalorder %s21, 0
      %p110 = por %p108, %p109
      %p111 = scmp.ne.s32.totalorder %s97, %s98
      %p112 = scmp.eq.s32.totalorder %s22, 1
      %p113 = por %p111, %p112
      %p115 = scmp.ne.s32.totalorder %s98, %s114
      %p116 = scmp.eq.s32.totalorder %s22, 0
      %p117 = por %p115, %p116
      %p118 = scmp.le.s32.totalorder 1, %s16
      %p119 = scmp.lt.s32.totalorder %s16, 3
      %p120 = pnand %p118, %p119
      %p121 = pneg %p120
      // Predicated region
      $region9: #{tpu_custom_call.1} parent=5 // pred_check
        _
      $region10: #{tpu_custom_call.1} parent=5 // pred_check_branch
        %123 = sbr.rel (%p120) target = $region12
      $region11: #{tpu_custom_call.1} parent=5 // pred_region
        %s124 = ssub.s32 %s16, 1
        // Predicated region
        $region13: #{tpu_custom_call.1} parent=11 // pred_check
          %p125 = pneg %p63
        $region14: #{tpu_custom_call.1} parent=11 // pred_check_branch
          %127 = sbr.rel (%p125) target = $region16
        $region15: #{tpu_custom_call.1} parent=11 // pred_region
          %s129 = ssub.s32 1024, 1024
          %130 = vsyncadd [#allocation6], %s129
          %s131 = sshll.u32 [#allocation5], 4
          %s132 = int_to_ptr.vmem [resolvable:$true] %s131
          %137 = dma.hbm_to_vmem [thread:$0]  %s1, 1024, %s132, [#allocation6], 64, 64, 4
        $region16: #{tpu_custom_call.1} parent=11 // pred_fallthru
          _
        // Predicated region
        $region17: #{tpu_custom_call.1} parent=11 // pred_check
          %p138 = pneg %p84
        $region18: #{tpu_custom_call.1} parent=11 // pred_check_branch
          %140 = sbr.rel (%p138) target = $region20
        $region19: #{tpu_custom_call.1} parent=11 // pred_region
          _
        $region20: #{tpu_custom_call.1} parent=11 // pred_fallthru
          _
      $region12: #{tpu_custom_call.1} parent=5 // pred_fallthru
        _
      %p141 = scmp.lt.s32.totalorder %s16, 2
      // Predicated region
      $region21: #{tpu_custom_call.1} parent=5 // pred_check
        %p142 = pneg %p141
      $region22: #{tpu_custom_call.1} parent=5 // pred_check_branch
        %144 = sbr.rel (%p142) target = $region24
      $region23: #{tpu_custom_call.1} parent=5 // pred_region
        // Predicated region
        $region25: #{tpu_custom_call.1} parent=23 // pred_check
          %p145 = pneg %p36
        $region26: #{tpu_custom_call.1} parent=23 // pred_check_branch
          %147 = sbr.rel (%p145) target = $region28
        $region27: #{tpu_custom_call.1} parent=23 // pred_region
          %s148 = sand.u32 %s26, 1
          %s149 = scalar_lea.sflag [#allocation3], %s148
          %s150 = sand.u32 %s26, 1
          %s151 = smul.addr %s150, 8
          %s152 = scalar_lea.vmem [#allocation2], %s151
          %s154 = ssub.s32 128, 128
          %155 = vsyncadd %s149, %s154
          %s156 = smul.addr %s16, 128
          %s157 = scalar_lea.hbm %s0, %s156
          %s159 = sshll.u32 %s152, 4
          %s160 = int_to_ptr.vmem [resolvable:$true] %s159
          %162 = dma.hbm_to_vmem [thread:$0]  %s157, 128, %s160, %s149
        $region28: #{tpu_custom_call.1} parent=23 // pred_fallthru
          _
      $region24: #{tpu_custom_call.1} parent=5 // pred_fallthru
        _
      %p163 = scmp.le.s32.totalorder 1, %s16
      %p164 = scmp.lt.s32.totalorder %s16, 3
      %p165 = pnand %p163, %p164
      %p166 = pneg %p165
      // Predicated region
      $region29: #{tpu_custom_call.1} parent=5 // pred_check
        _
      $region30: #{tpu_custom_call.1} parent=5 // pred_check_branch
        %168 = sbr.rel (%p165) target = $region32
      $region31: #{tpu_custom_call.1} parent=5 // pred_region
        %s169 = ssub.s32 %s16, 1
        %s170 = sand.u32 %s29, 1
        %s171 = scalar_lea.sflag [#allocation3], %s170
        %s172 = sand.u32 %s29, 1
        %s173 = smul.addr %s172, 8
        %s174 = scalar_lea.vmem [#allocation2], %s173
        // Predicated region
        $region33: #{tpu_custom_call.1} parent=31 // pred_check
          %p175 = pneg %p42
        $region34: #{tpu_custom_call.1} parent=31 // pred_check_branch
          %177 = sbr.rel (%p175) target = $region36
        $region35: #{tpu_custom_call.1} parent=31 // pred_region
          %178 = dma.done %s171, 128
        $region36: #{tpu_custom_call.1} parent=31 // pred_fallthru
          _
        // Predicated region
        $region37: #{tpu_custom_call.1} parent=31 // pred_check
          %p179 = pneg %p63
        $region38: #{tpu_custom_call.1} parent=31 // pred_check_branch
          %181 = sbr.rel (%p179) target = $region40
        $region39: #{tpu_custom_call.1} parent=31 // pred_region
          %182 = dma.done [#allocation6], 1024
        $region40: #{tpu_custom_call.1} parent=31 // pred_fallthru
          _
        %s183 = sand.u32 %s29, 1
        %s184 = scalar_lea.sflag [#allocation3], %s183
        %s185 = sand.u32 %s29, 1
        %s186 = smul.addr %s185, 8
        %s187 = scalar_lea.vmem [#allocation2], %s186
        %p188 = pneg %p42
        %p189 = pneg %p39
        %p190 = pneg %p63
        %p191 = pneg %p60
        %p192 = pneg %p84
        %p193 = pneg %p81
        %p194 = pneg %p110
        %p195 = pneg %p107
        %s196 = sand.u32 %s97, 1
        %s197 = scalar_lea.sflag [#allocation4], %s196
        %s198 = sand.u32 %s97, 1
        %s199 = smul.addr %s198, 8
        %s200 = scalar_lea.vmem [#allocation7], %s199
        %v202 = vld [vmem:[%s174] sm:$0xff]
        %v203 = vlaneseq
        %v204 = vand.u32 %v203, 127
        %205 = vset.pattern.permute.xlu0 0
        %206 = vperm.xlu0 %205, %v202
        %v207 = vpop.permute.xlu0 %206
        %vm208 = vcmp.eq.s32.totalorder %v207, %v204
        %v209 = vsel %vm208, 1, 0
        %v210 = vcvt.s32.f32 %v209
        %v211 = vadd.f32 %v210, 0.0
        %212 = vset.pattern.permute.xlu0 1
        %213 = vperm.xlu0 %212, %v202
        %v214 = vpop.permute.xlu0 %213
        %vm215 = vcmp.eq.s32.totalorder %v214, %v204
        %v216 = vsel %vm215, 1, 0
        %v217 = vcvt.s32.f32 %v216
        %v218 = vadd.f32 %v211, %v217
        %219 = vset.pattern.permute.xlu0 2
        %220 = vperm.xlu0 %219, %v202
        %v221 = vpop.permute.xlu0 %220
        %vm222 = vcmp.eq.s32.totalorder %v221, %v204
        %v223 = vsel %vm222, 1, 0
        %v224 = vcvt.s32.f32 %v223
        %v225 = vadd.f32 %v218, %v224
        %226 = vset.pattern.permute.xlu0 3
        %227 = vperm.xlu0 %226, %v202
        %v228 = vpop.permute.xlu0 %227
        %vm229 = vcmp.eq.s32.totalorder %v228, %v204
        %v230 = vsel %vm229, 1, 0
        %v231 = vcvt.s32.f32 %v230
        %v232 = vadd.f32 %v225, %v231
        %233 = vset.pattern.permute.xlu0 4
        %234 = vperm.xlu0 %233, %v202
        %v235 = vpop.permute.xlu0 %234
        %vm236 = vcmp.eq.s32.totalorder %v235, %v204
        %v237 = vsel %vm236, 1, 0
        %v238 = vcvt.s32.f32 %v237
        %v239 = vadd.f32 %v232, %v238
        %240 = vset.pattern.permute.xlu0 5
        %241 = vperm.xlu0 %240, %v202
        %v242 = vpop.permute.xlu0 %241
        %vm243 = vcmp.eq.s32.totalorder %v242, %v204
        %v244 = vsel %vm243, 1, 0
        %v245 = vcvt.s32.f32 %v244
        %v246 = vadd.f32 %v239, %v245
        %247 = vset.pattern.permute.xlu0 6
        %248 = vperm.xlu0 %247, %v202
        %v249 = vpop.permute.xlu0 %248
        %vm250 = vcmp.eq.s32.totalorder %v249, %v204
        %v251 = vsel %vm250, 1, 0
        %v252 = vcvt.s32.f32 %v251
        %v253 = vadd.f32 %v246, %v252
        %254 = vset.pattern.permute.xlu0 7
        %255 = vperm.xlu0 %254, %v202
        %v256 = vpop.permute.xlu0 %255
        %vm257 = vcmp.eq.s32.totalorder %v256, %v204
        %v258 = vsel %vm257, 1, 0
        %v259 = vcvt.s32.f32 %v258
        %v260 = vadd.f32 %v253, %v259
        %261 = vset.pattern.permute.xlu0 8
        %262 = vperm.xlu0 %261, %v202
        %v263 = vpop.permute.xlu0 %262
        %vm264 = vcmp.eq.s32.totalorder %v263, %v204
        %v265 = vsel %vm264, 1, 0
        %v266 = vcvt.s32.f32 %v265
        %v267 = vadd.f32 %v266, 0.0
        %268 = vset.pattern.permute.xlu0 9
        %269 = vperm.xlu0 %268, %v202
        %v270 = vpop.permute.xlu0 %269
        %vm271 = vcmp.eq.s32.totalorder %v270, %v204
        %v272 = vsel %vm271, 1, 0
        %v273 = vcvt.s32.f32 %v272
        %v274 = vadd.f32 %v267, %v273
        %275 = vset.pattern.permute.xlu0 10
        %276 = vperm.xlu0 %275, %v202
        %v277 = vpop.permute.xlu0 %276
        %vm278 = vcmp.eq.s32.totalorder %v277, %v204
        %v279 = vsel %vm278, 1, 0
        %v280 = vcvt.s32.f32 %v279
        %v281 = vadd.f32 %v274, %v280
        %282 = vset.pattern.permute.xlu0 11
        %283 = vperm.xlu0 %282, %v202
        %v284 = vpop.permute.xlu0 %283
        %vm285 = vcmp.eq.s32.totalorder %v284, %v204
        %v286 = vsel %vm285, 1, 0
        %v287 = vcvt.s32.f32 %v286
        %v288 = vadd.f32 %v281, %v287
        %289 = vset.pattern.permute.xlu0 12
        %290 = vperm.xlu0 %289, %v202
        %v291 = vpop.permute.xlu0 %290
        %vm292 = vcmp.eq.s32.totalorder %v291, %v204
        %v293 = vsel %vm292, 1, 0
        %v294 = vcvt.s32.f32 %v293
        %v295 = vadd.f32 %v288, %v294
        %296 = vset.pattern.permute.xlu0 13
        %297 = vperm.xlu0 %296, %v202
        %v298 = vpop.permute.xlu0 %297
        %vm299 = vcmp.eq.s32.totalorder %v298, %v204
        %v300 = vsel %vm299, 1, 0
        %v301 = vcvt.s32.f32 %v300
        %v302 = vadd.f32 %v295, %v301
        %303 = vset.pattern.permute.xlu0 14
        %304 = vperm.xlu0 %303, %v202
        %v305 = vpop.permute.xlu0 %304
        %vm306 = vcmp.eq.s32.totalorder %v305, %v204
        %v307 = vsel %vm306, 1, 0
        %v308 = vcvt.s32.f32 %v307
        %v309 = vadd.f32 %v302, %v308
        %310 = vset.pattern.permute.xlu0 15
        %311 = vperm.xlu0 %310, %v202
        %v312 = vpop.permute.xlu0 %311
        %vm313 = vcmp.eq.s32.totalorder %v312, %v204
        %v314 = vsel %vm313, 1, 0
        %v315 = vcvt.s32.f32 %v314
        %v316 = vadd.f32 %v309, %v315
        %318 = vrot.lane.b32.xlu0 %v316, 64
        %v319 = vpop.permute.xlu0 %318
        %vm321 = vcmask 523264
        %v322 = vsel %vm321, %v260, %v319
        %v323 = vpack.c.bf16 %v322, %v322
        %v324 = vld [vmem:[#allocation5] sm:$0xf]
        %v325 = vld [vmem:[#allocation5 + $0x4] sm:$0xf]
        %v326 = vld [vmem:[#allocation5 + $0x8] sm:$0xf]
        %v327 = vld [vmem:[#allocation5 + $0xc] sm:$0xf]
        %v328 = vld [vmem:[#allocation5 + $0x10] sm:$0xf]
        %v329 = vld [vmem:[#allocation5 + $0x14] sm:$0xf]
        %v330 = vld [vmem:[#allocation5 + $0x18] sm:$0xf]
        %v331 = vld [vmem:[#allocation5 + $0x1c] sm:$0xf]
        %v332 = vld [vmem:[#allocation5 + $0x20] sm:$0xf]
        %v333 = vld [vmem:[#allocation5 + $0x24] sm:$0xf]
        %v334 = vld [vmem:[#allocation5 + $0x28] sm:$0xf]
        %v335 = vld [vmem:[#allocation5 + $0x2c] sm:$0xf]
        %v336 = vld [vmem:[#allocation5 + $0x30] sm:$0xf]
        %v337 = vld [vmem:[#allocation5 + $0x34] sm:$0xf]
        %v338 = vld [vmem:[#allocation5 + $0x38] sm:$0xf]
        %v339 = vld [vmem:[#allocation5 + $0x3c] sm:$0xf]
        %v340 = vld [vmem:[%s2] sm:$0x1]
        %v342 = vlaneseq
        %v343 = vshrl.u32 %v342, 7
        %v344 = vsub.s32 0, %v343
        %v345 = vrot.slane %v340, %v344
        %v363 = vunpack.c.l.b16 %v324
        %v364 = vunpack.c.l.b16 %v325
        %v365 = vunpack.c.l.b16 %v326
        %v366 = vunpack.c.l.b16 %v327
        %v367 = vunpack.c.l.b16 %v328
        %v368 = vunpack.c.l.b16 %v329
        %v369 = vunpack.c.l.b16 %v330
        %v370 = vunpack.c.l.b16 %v331
        %v371 = vunpack.c.l.b16 %v332
        %v372 = vunpack.c.l.b16 %v333
        %v373 = vunpack.c.l.b16 %v334
        %v374 = vunpack.c.l.b16 %v335
        %v375 = vunpack.c.l.b16 %v336
        %v376 = vunpack.c.l.b16 %v337
        %v377 = vunpack.c.l.b16 %v338
        %v378 = vunpack.c.l.b16 %v339
        %v379 = vpack.c.b16 %v364, %v363
        %v380 = vpack.c.b16 %v366, %v365
        %v381 = vpack.c.b16 %v368, %v367
        %v382 = vpack.c.b16 %v370, %v369
        %v383 = vpack.c.b16 %v372, %v371
        %v384 = vpack.c.b16 %v374, %v373
        %v385 = vpack.c.b16 %v376, %v375
        %v386 = vpack.c.b16 %v378, %v377
        %395 = vmatprep.subr.bf16.mxu0 0
        %396 = vmatpush1.bf16.msra.mxu0 %v379
        %397 = vmatprep.subr.bf16.mxu0 0
        %398 = vmatpush1.bf16.msra.mxu0 %v380
        %399 = vmatprep.subr.bf16.mxu0 0
        %400 = vmatpush1.bf16.msra.mxu0 %v381
        %401 = vmatprep.subr.bf16.mxu0 0
        %402 = vmatpush1.bf16.msra.mxu0 %v382
        %403 = vmatprep.subr.bf16.mxu0 0
        %404 = vmatpush1.bf16.msra.mxu0 %v383
        %405 = vmatprep.subr.bf16.mxu0 0
        %406 = vmatpush1.bf16.msra.mxu0 %v384
        %407 = vmatprep.subr.bf16.mxu0 0
        %408 = vmatpush1.bf16.msra.mxu0 %v385
        %409 = vmatprep.subr.bf16.mxu0 0
        %410 = vmatpush1.bf16.msra.mxu0 %v386
        %411 = vmatprep.subr.bf16.mxu0 0
        %412 = vmatpush1.bf16.msra.mxu0 0
        %413 = vmatprep.subr.bf16.mxu0 0
        %414 = vmatpush1.bf16.msra.mxu0 0
        %415 = vmatprep.subr.bf16.mxu0 0
        %416 = vmatpush1.bf16.msra.mxu0 0
        %417 = vmatprep.subr.bf16.mxu0 0
        %418 = vmatpush1.bf16.msra.mxu0 0
        %419 = vmatprep.subr.bf16.mxu0 0
        %420 = vmatpush1.bf16.msra.mxu0 0
        %421 = vmatprep.subr.bf16.mxu0 0
        %422 = vmatpush1.bf16.msra.mxu0 0
        %423 = vmatprep.subr.bf16.mxu0 0
        %424 = vmatpush1.bf16.msra.mxu0 0
        %425 = vmatprep.subr.bf16.mxu0 0
        %426 = vmatpush1.bf16.msra.mxu0 0
        %427 = vmatprep.mubr.bf16.mxu0 0
        %428 = vmatmul.mubr.bf16.gmra.mrb[0].mxu0 %v323
        %v429 = vpop.f32.mrb[0].mxu0
        %v430 = vadd.f32 %v345, %v429
        %v431 = vpop.f32.mrb[0].mxu0
        %v432 = vpop.f32.mrb[0].mxu0
        %v433 = vpop.f32.mrb[0].mxu0
        %434 = vdwg.mxu0
        %435 = vst [vmem:[%s200] sm:$0xff] %v430
        %s436 = sand.u32 %s97, 1
        %s437 = scalar_lea.sflag [#allocation4], %s436
        %s438 = sand.u32 %s97, 1
        %s439 = smul.addr %s438, 8
        %s440 = scalar_lea.vmem [#allocation7], %s439
        // Predicated region
        $region41: #{tpu_custom_call.1} parent=31 // pred_check
          %p441 = pneg %p107
        $region42: #{tpu_custom_call.1} parent=31 // pred_check_branch
          %443 = sbr.rel (%p441) target = $region44
        $region43: #{tpu_custom_call.1} parent=31 // pred_region
          %s445 = ssub.s32 128, 128
          %446 = vsyncadd %s437, %s445
          %s447 = smul.addr %s21, 128
          %s448 = scalar_lea.hbm %s3, %s447
          %s450 = sshll.u32 %s440, 4
          %s451 = int_to_ptr.vmem [resolvable:$true] %s450
          %453 = dma.vmem_to_hbm [thread:$0]  %s451, 128, %s448, %s437
        $region44: #{tpu_custom_call.1} parent=31 // pred_fallthru
          _
      $region32: #{tpu_custom_call.1} parent=5 // pred_fallthru
        _
      %p454 = scmp.le.s32.totalorder 2, %s16
      // Predicated region
      $region45: #{tpu_custom_call.1} parent=5 // pred_check
        %p455 = pneg %p454
      $region46: #{tpu_custom_call.1} parent=5 // pred_check_branch
        %457 = sbr.rel (%p455) target = $region48
      $region47: #{tpu_custom_call.1} parent=5 // pred_region
        %s458 = ssub.s32 %s16, 2
        // Predicated region
        $region49: #{tpu_custom_call.1} parent=47 // pred_check
          %p459 = pneg %p113
        $region50: #{tpu_custom_call.1} parent=47 // pred_check_branch
          %461 = sbr.rel (%p459) target = $region52
        $region51: #{tpu_custom_call.1} parent=47 // pred_region
          %s462 = sand.u32 %s98, 1
          %s463 = scalar_lea.sflag [#allocation4], %s462
          %s464 = sand.u32 %s98, 1
          %s465 = smul.addr %s464, 8
          %s466 = scalar_lea.vmem [#allocation7], %s465
          %467 = dma.done %s463, 128
        $region52: #{tpu_custom_call.1} parent=47 // pred_fallthru
          _
      $region48: #{tpu_custom_call.1} parent=5 // pred_fallthru
        _
    $region6: #{tpu_custom_call.1} parent=1 // loop_footer
      %s20 = sadd.s32 1, %s16
    $region7: #{tpu_custom_call.1} parent=1 // loop_footer_branch
      %15 = sbr.rel target = $region3
    $region8: #{tpu_custom_call.1} parent=1 // loop_exit
      _
    %468 = vsyncpa [#allocation3], 1
    %s469 = scalar_lea.sflag [#allocation3], 1
    %470 = vsyncpa %s469, 1
    %471 = vsyncpa [#allocation6], 1
    %472 = vsyncpa [#allocation4], 1
    %s473 = scalar_lea.sflag [#allocation4], 1
    %474 = vsyncpa %s473, 1

</llo_original>
